<compile_context>
chip_gen: v7x
topology: tpu7x:2x2x1
jax: 0.10.0
libtpu: 0.0.40
codegen_flags: <defaults>
</compile_context>

<pallas_src>
import math
from functools import lru_cache

import jax
import jax.numpy as jnp
from jax.experimental import pallas as pl
from jax.experimental.pallas import tpu as pltpu

_LANE = 128
_SMALL_INPUT_BYTES = 512 * 1024      # below this, XLA's fused add wins (launch cost)
_MIN_GRID_STEPS = 2                  # keep both v7x TensorCores busy
_DEFAULT_TILE_BYTES = 4 * 1024 * 1024
_MIN_TILE_BYTES = 2 * 1024 * 1024
_MAX_TILE_BYTES = 8 * 1024 * 1024


def _double_kernel(x_ref, o_ref):
    # Hot path: elementwise x + x on the VPU for the current VMEM tile.
    x = x_ref[...]
    o_ref[...] = x + x


def _sublane_multiple(dtype) -> int:
    itemsize = jnp.dtype(dtype).itemsize
    return {4: 8, 2: 16, 1: 32}.get(itemsize, 8)


@lru_cache(maxsize=1)
def _tile_byte_budget() -> int:
    """Generation-aware per-tile byte budget (double-buffered in+out ~= 4.5x this)."""
    try:
        vmem = int(pltpu.get_tpu_info().vmem_capacity_bytes)
    except Exception:  # API drift / not on TPU: conservative default
        return _DEFAULT_TILE_BYTES
    # ~vmem/10: 8 MiB tiles on v5e/v6e (128 MiB VMEM), ~6.4 MiB on v7x (64 MiB),
    # so total buffering (~4.5x tile) stays well under physical VMEM everywhere.
    return max(_MIN_TILE_BYTES, min(_MAX_TILE_BYTES, vmem // 10))


def _round_up(x: int, m: int) -> int:
    return -(-x // m) * m


def _pick_lane_width(total: int) -> int:
    """Largest lane-dense column count dividing `total`, preferring >= 8 rows."""
    candidates = (2048, 1024, 512, 256, 128)
    for c in candidates:
        if total % c == 0 and total // c >= 8:
            return c
    for c in candidates:
        if total % c == 0:
            return c
    return _LANE  # unreachable when total % 128 == 0


def module2_forward(foo: jax.Array, *, min_pallas_bytes: int = _SMALL_INPUT_BYTES) -> jax.Array:
    """Pallas implementation of Module2.forward (CustomFunc1.forward: foo + foo)."""
    orig_shape = foo.shape
    dtype = foo.dtype
    total = math.prod(orig_shape) if orig_shape else 1
    itemsize = jnp.dtype(dtype).itemsize

    # ---- plain-XLA paths -----------------------------------------------------
    if total == 0 or total * itemsize < min_pallas_bytes:
        # Tiny / empty tensors: kernel launch overhead dominates.
        return foo + foo
    if total % _LANE != 0:
        # Lane-sparse residual shapes: padded / bulk+tail Pallas routes would add
        # extra full HBM passes; XLA's fused elementwise add is already at the
        # bandwidth roofline for these, and this also removes any VMEM-overrun
        # risk for huge non-128-divisible last dims.
        # TODO(synk): add a 1-D ragged-tail Pallas path if such shapes ever dominate.
        return foo + foo

    # ---- lane-dense, pad-free 2-D view ---------------------------------------
    # Elementwise op => any row-major reshape is valid and metadata-only in XLA.
    C = _pick_lane_width(total)
    R = total // C
    x2d = foo.reshape(R, C)

    # ---- block sizing: byte-budgeted rows, dtype-aware sublane rounding ------
    sublane = _sublane_multiple(dtype)
    row_bytes = C * itemsize
    budget = _tile_byte_budget()
    tm = max(sublane, (budget // row_bytes) // sublane * sublane)
    if pl.cdiv(R, tm) < _MIN_GRID_STEPS:
        # Whole tensor fits in one budget tile: split the rows so the grid still
        # has >= _MIN_GRID_STEPS independent ("parallel") steps and the second
        # TensorCore on v7x is not idled.
        tm = max(sublane, _round_up(pl.cdiv(R, _MIN_GRID_STEPS), sublane))
    tm = min(tm, R)  # tm == R (full extent) is always a legal block shape
    grid = (pl.cdiv(R, tm),)  # ragged last block handled by Pallas masking

    tile_bytes = tm * C * itemsize
    # Double-buffered input + output ~= 4x tile; add headroom, never below the
    # stock scoped default, and cap well under v7x's 64 MiB physical VMEM.
    vmem_limit = min(48 << 20, max(32 << 20, int(4.5 * tile_bytes) + (2 << 20)))

    out2d = pl.pallas_call(
        _double_kernel,
        out_shape=jax.ShapeDtypeStruct((R, C), dtype),
        grid_spec=pltpu.PrefetchScalarGridSpec(
            num_scalar_prefetch=0,
            grid=grid,
            in_specs=[pl.BlockSpec((tm, C), lambda i: (i, 0))],
            out_specs=pl.BlockSpec((tm, C), lambda i: (i, 0)),
        ),
        compiler_params=pltpu.CompilerParams(
            # Row blocks are independent -> megacore / 2-TC sharding on v7x.
            dimension_semantics=("parallel",),
            vmem_limit_bytes=vmem_limit,
        ),
        # Advisory hint so XLA can schedule/overlap around this HBM-bound call.
        cost_estimate=pl.CostEstimate(
            flops=total, transcendentals=0, bytes_accessed=2 * total * itemsize
        ),
    )(x2d)
    # NOTE: pipeline_mode=pl.Buffered(3) on the input spec is a possible <=5%
    # v7x win but costs VMEM; left at default double-buffering (needs a sweep).

    return out2d.reshape(orig_shape)


if __name__ == "__main__":
    key = jax.random.PRNGKey(0)

    # Main case: small 4-D tensor like an arbitrary Module2 input.
    # Default call takes the plain-XLA fast path (kernel overhead > transfer).
    foo = jax.random.normal(key, (2, 4, 16, 16), dtype=jnp.float32)
    res = module2_forward(foo)
    jax.block_until_ready(res)
    expected = foo + foo
    assert res.shape == expected.shape and res.dtype == expected.dtype
    assert jnp.allclose(res, expected), "mismatch on fast path"

    # Same small tensor, forced through the Pallas kernel (validates the kernel).
    res_k = module2_forward(foo, min_pallas_bytes=0)
    jax.block_until_ready(res_k)
    assert jnp.allclose(res_k, expected), "mismatch on forced Pallas path"

    # Moderate f32 tensor (4 MiB): exercises the default Pallas path with a
    # multi-step ("parallel") row grid.
    foo_big = jax.random.normal(jax.random.PRNGKey(1), (8, 256, 512), dtype=jnp.float32)
    res_big = module2_forward(foo_big)
    jax.block_until_ready(res_big)
    assert jnp.allclose(res_big, foo_big + foo_big), "mismatch on large f32"

    # bf16 (sub-32-bit sublane-packing path), 1 MiB -> Pallas path.
    foo_bf = jax.random.normal(jax.random.PRNGKey(2), (4, 128, 1024)).astype(jnp.bfloat16)
    res_bf = module2_forward(foo_bf)
    jax.block_until_ready(res_bf)
    assert res_bf.dtype == jnp.bfloat16
    assert jnp.allclose(res_bf.astype(jnp.float32),
                        (foo_bf + foo_bf).astype(jnp.float32)), "mismatch on bf16"

    # Non-128-divisible total -> lane-sparse residual handled by XLA.
    foo_odd = jax.random.normal(jax.random.PRNGKey(3), (3, 5, 7), dtype=jnp.float32)
    res_odd = module2_forward(foo_odd)
    jax.block_until_ready(res_odd)
    assert jnp.allclose(res_odd, foo_odd + foo_odd), "mismatch on odd shape"

    print("KERNEL_OK")
</pallas_src>

<mosaic_0001>
module attributes {stable_mosaic.version = 11 : i64} {
  func.func @_double_kernel(%arg0: i32, %arg1: memref<8x256xf32, #tpu.memory_space<vmem>>, %arg2: memref<8x256xf32, #tpu.memory_space<vmem>>) attributes {dimension_semantics = [#tpu.dimension_semantics<parallel>], iteration_bounds = array<i64: 1>, scalar_prefetch = 0 : i64, scratch_operands = 0 : i64, tpu.core_type = #tpu.core_type<tc>, window_params = [{transform_indices = @transform_0, window_bounds = array<i64: 8, 256>}, {transform_indices = @transform_1, window_bounds = array<i64: 8, 256>}]} {
    %c0 = arith.constant 0 : index
    %c0_0 = arith.constant 0 : index
    %0 = vector.load %arg1[%c0, %c0_0] : memref<8x256xf32, #tpu.memory_space<vmem>>, vector<8x256xf32>
    %1 = arith.addf %0, %0 : vector<8x256xf32>
    %c0_1 = arith.constant 0 : index
    %c0_2 = arith.constant 0 : index
    %2 = vector.load %arg2[%c0_1, %c0_2] : memref<8x256xf32, #tpu.memory_space<vmem>>, vector<8x256xf32>
    tpu.vector_store %arg2[%c0_1, %c0_2], %1 {strides = array<i32>} : memref<8x256xf32, #tpu.memory_space<vmem>>, vector<8x256xf32>,
    return
  }
  func.func @transform_0(%arg0: i32) -> (i32, i32) {
    %c0_i32 = arith.constant 0 : i32
    %c0_i32_0 = arith.constant 0 : i32
    return %arg0, %c0_i32 : i32, i32
  }
  func.func @transform_1(%arg0: i32) -> (i32, i32) {
    %c0_i32 = arith.constant 0 : i32
    %c0_i32_0 = arith.constant 0 : i32
    return %arg0, %c0_i32 : i32, i32
  }
}

</mosaic_0001>

<llo_original>
// kernel: tpu_custom_call.1
$region0: #{tpu_custom_call.1}
  #allocation0 [shape = 'u32[]', space=smem, size = 0x4, offset = 0x4, fixed_abs, tag = 'smem constant byte address 0x4 - core index']
  #allocation1 [shape = 'u32[144,128]{1,0:T(1,128)}', space=vmem, size = 0x12000, scoped, tag = 'internal scratch']
  %s0 = inlined_call_operand.hbm [shape: f32[8,256], index: 0, kind: input, shape index: {}]
  %s1 = inlined_call_operand.hbm [shape: f32[8,256], index: 1, kind: output, shape index: {}]
  %s2 = sld [smem:[#allocation0]]
  $region18: #{tpu_custom_call.1} parent=0
    _
  %s4 = ssub.s32 1, %s2
  %s5 = scalar_select 0, %s4, %s2
  $region1: #{tpu_custom_call.1} parent=0
    #allocation2 [shape = 'u8[8192]{0}', space=vmem, size = 0x2000, scoped, tag = 'input window, operand 0, single buffered']
    #allocation3 [shape = 's32[1]{0}', space=sflag, size = 0x4, scoped, tag = 'scoped memory for tpu_custom_call.1']
    #allocation4 [shape = 's32[1]{0}', space=sflag, size = 0x4, scoped, tag = 'scoped memory for tpu_custom_call.1']
    #allocation5 [shape = 'u8[8192]{0}', space=vmem, size = 0x2000, scoped, tag = 'output window, operand 0, single buffered']
    %6 = vsyncpa [#allocation3], 0
    %7 = vsyncpa [#allocation4], 0
    // Predicated region
    $region2: #{tpu_custom_call.1} parent=1 // pred_check
      _
    $region3: #{tpu_custom_call.1} parent=1 // pred_check_branch
      %9 = sbr.rel (0) target = $region5
    $region4: #{tpu_custom_call.1} parent=1 // pred_region
      %s11 = ssub.s32 256, 256
      %12 = vsyncadd [#allocation3], %s11
      %s14 = sshll.u32 [#allocation2], 4
      %s15 = int_to_ptr.vmem [resolvable:$true] %s14
      %17 = dma.hbm_to_vmem [thread:$0]  %s0, 256, %s15, [#allocation3]
    $region5: #{tpu_custom_call.1} parent=1 // pred_fallthru
      _
    // Predicated region
    $region6: #{tpu_custom_call.1} parent=1 // pred_check
      _
    $region7: #{tpu_custom_call.1} parent=1 // pred_check_branch
      %19 = sbr.rel (0) target = $region9
    $region8: #{tpu_custom_call.1} parent=1 // pred_region
      %20 = dma.done [#allocation3], 256
    $region9: #{tpu_custom_call.1} parent=1 // pred_fallthru
      _
    %v21 = vld [vmem:[#allocation2] sm:$0xff]
    %v22 = vld [vmem:[#allocation2 + $0x8] sm:$0xff]
    %v23 = vadd.f32 %v21, %v21
    %v24 = vadd.f32 %v22, %v22
    %25 = vst [vmem:[#allocation5] sm:$0xff] %v23
    %26 = vst [vmem:[#allocation5 + $0x8] sm:$0xff] %v24
    // Predicated region
    $region10: #{tpu_custom_call.1} parent=1 // pred_check
      _
    $region11: #{tpu_custom_call.1} parent=1 // pred_check_branch
      %28 = sbr.rel (0) target = $region13
    $region12: #{tpu_custom_call.1} parent=1 // pred_region
      %s30 = ssub.s32 256, 256
      %31 = vsyncadd [#allocation4], %s30
      %s33 = sshll.u32 [#allocation5], 4
      %s34 = int_to_ptr.vmem [resolvable:$true] %s33
      %36 = dma.vmem_to_hbm [thread:$0]  %s34, 256, %s1, [#allocation4]
    $region13: #{tpu_custom_call.1} parent=1 // pred_fallthru
      _
    // Predicated region
    $region14: #{tpu_custom_call.1} parent=1 // pred_check
      _
    $region15: #{tpu_custom_call.1} parent=1 // pred_check_branch
      %38 = sbr.rel (0) target = $region17
    $region16: #{tpu_custom_call.1} parent=1 // pred_region
      %39 = dma.done [#allocation4], 256
    $region17: #{tpu_custom_call.1} parent=1 // pred_fallthru
      _
    %40 = vsyncpa [#allocation3], 1
    %41 = vsyncpa [#allocation4], 1

</llo_original>
